<compile_context>
chip_gen: v7x
topology: tpu7x:2x2x1
jax: 0.10.0
libtpu: 0.0.40
codegen_flags: <defaults>
</compile_context>

<pallas_src>
import functools
import math
from collections import namedtuple

import jax
import jax.numpy as jnp
from jax.experimental import pallas as pl
from jax.experimental.pallas import tpu as pltpu

Samples = namedtuple("Samples", ["input", "target", "metadata"])

_NEG = -1e30                      # class-padding value: exp() underflows to 0
_LANES = 128
_SUBLANES = 8
_PART_SHAPE = (_SUBLANES, _LANES)  # lane/sublane aligned per-tile partial block


# ------------------------------- helpers -------------------------------------

def _round_up(x, m):
    return (x + m - 1) // m * m


def _pick_bn(n, per_row_bytes, fixed_bytes, budget=8 * 1024 * 1024, cap=512):
    """Largest row tile (mult of 8, MXU-aligned when >=128) within a VMEM budget."""
    avail = max(budget - fixed_bytes, per_row_bytes * 8)
    bn = max(8, avail // max(per_row_bytes, 1))
    bn = min(bn, cap)
    bn = (bn // 128) * 128 if bn >= 128 else (bn // 8) * 8
    return int(min(max(bn, 8), _round_up(n, 8)))


def _cparams():
    return pltpu.CompilerParams(
        dimension_semantics=("parallel",),
        vmem_limit_bytes=32 * 1024 * 1024,
    )


def _row_valid_mask(bn, n_valid):
    """(bn, 1) bool mask: global row index < n_valid (masks padded rows)."""
    row = pl.program_id(0) * bn + jax.lax.broadcasted_iota(jnp.int32, (bn, 1), 0)
    return row < n_valid


def _energy_partial(logits, valid):
    # -sum over valid rows of logsumexp(logits, -1)
    m = jnp.max(logits, axis=-1, keepdims=True)
    lse = jnp.log(jnp.sum(jnp.exp(logits - m), axis=-1, keepdims=True)) + m
    return -jnp.sum(jnp.where(valid, lse, 0.0))


def _xent_partials(logits, t, valid, n_classes):
    # Fused log_softmax + NLL(sum) + argmax-correct + valid-count for one tile.
    bn, vp = logits.shape
    m = jnp.max(logits, axis=-1, keepdims=True)
    p = jnp.exp(logits - m)                                    # reused for lse
    lse = jnp.log(jnp.sum(p, axis=-1, keepdims=True)) + m
    col = jax.lax.broadcasted_iota(jnp.int32, (bn, vp), 1)
    tgt_logit = jnp.sum(jnp.where(col == t, logits, 0.0), axis=-1, keepdims=True)
    ok = valid & (t >= 0) & (t < n_classes)      # mask padded / ignore targets
    loss = jnp.sum(jnp.where(ok, lse - tgt_logit, 0.0))
    argmax = jnp.min(jnp.where(logits == m, col, vp), axis=-1, keepdims=True)
    correct = jnp.sum(jnp.where(ok & (argmax == t), 1, 0)).astype(jnp.int32)
    count = jnp.sum(ok.astype(jnp.int32))
    return loss, correct, count


# ------------------------------- kernels --------------------------------------

def _fused_energy_kernel(x_ref, w_ref, b_ref, out_ref, *, n_valid, bn):
    # logits tile computed in VMEM (bf16 MXU, f32 accumulate), reduced in place.
    logits = jnp.dot(x_ref[...], w_ref[...],
                     preferred_element_type=jnp.float32) + b_ref[...]
    part = _energy_partial(logits, _row_valid_mask(bn, n_valid))
    out_ref[...] = jnp.broadcast_to(part, out_ref.shape)


def _fused_xent_kernel(x_ref, w_ref, b_ref, t_ref, loss_ref, corr_ref, cnt_ref,
                       *, n_valid, n_classes, bn):
    logits = jnp.dot(x_ref[...], w_ref[...],
                     preferred_element_type=jnp.float32) + b_ref[...]
    loss, correct, count = _xent_partials(
        logits, t_ref[...], _row_valid_mask(bn, n_valid), n_classes)
    loss_ref[...] = jnp.broadcast_to(loss, loss_ref.shape)
    corr_ref[...] = jnp.broadcast_to(correct, corr_ref.shape)
    cnt_ref[...] = jnp.broadcast_to(count, cnt_ref.shape)


def _energy_kernel(x_ref, out_ref, *, n_valid, bn):
    # Precomputed-logits path.
    logits = x_ref[...].astype(jnp.float32)
    part = _energy_partial(logits, _row_valid_mask(bn, n_valid))
    out_ref[...] = jnp.broadcast_to(part, out_ref.shape)


def _xent_kernel(x_ref, t_ref, loss_ref, corr_ref, cnt_ref,
                 *, n_valid, n_classes, bn):
    logits = x_ref[...].astype(jnp.float32)
    loss, correct, count = _xent_partials(
        logits, t_ref[...], _row_valid_mask(bn, n_valid), n_classes)
    loss_ref[...] = jnp.broadcast_to(loss, loss_ref.shape)
    corr_ref[...] = jnp.broadcast_to(correct, corr_ref.shape)
    cnt_ref[...] = jnp.broadcast_to(count, cnt_ref.shape)


# ------------------------------- wrappers --------------------------------------

def _prep_inputs_fused(x, w, b, bn):
    B, T, D = x.shape
    V = w.shape[1]
    N = B * T
    Dp, Vp = _round_up(D, _LANES), _round_up(V, _LANES)
    if bn is None:
        per_row = 2 * Dp * 2 + 3 * Vp * 4 + 4            # bf16 x (x2 buf) + f32 work
        fixed = 2 * Dp * Vp * 2 + Vp * 4                 # resident W (bf16) + bias
        bn = _pick_bn(N, per_row, fixed)
    Np = _round_up(N, bn)
    xf = jnp.pad(x.reshape(N, D).astype(jnp.bfloat16), ((0, Np - N), (0, Dp - D)))
    wp = jnp.pad(w.astype(jnp.bfloat16), ((0, Dp - D), (0, Vp - V)))
    bp = jnp.pad(b.astype(jnp.float32).reshape(1, V),
                 ((0, 0), (0, Vp - V)), constant_values=_NEG)
    return xf, wp, bp, N, V, Dp, Vp, Np, bn


def fused_linear_energy(x, w, b, *, bn=None):
    """Energy for a linear model: -sum(logsumexp(x @ W + b, -1)), matmul fused."""
    xf, wp, bp, N, _, Dp, Vp, Np, bn = _prep_inputs_fused(x, w, b, bn)
    tiles = Np // bn
    part = pl.pallas_call(
        functools.partial(_fused_energy_kernel, n_valid=N, bn=bn),
        out_shape=jax.ShapeDtypeStruct((tiles,) + _PART_SHAPE, jnp.float32),
        grid_spec=pltpu.PrefetchScalarGridSpec(
            num_scalar_prefetch=0,
            grid=(tiles,),
            in_specs=[
                pl.BlockSpec((bn, Dp), lambda i: (i, 0)),
                pl.BlockSpec((Dp, Vp), lambda i: (0, 0)),
                pl.BlockSpec((1, Vp), lambda i: (0, 0)),
            ],
            out_specs=pl.BlockSpec((1,) + _PART_SHAPE, lambda i: (i, 0, 0)),
        ),
        compiler_params=_cparams(),
    )(xf, wp, bp)
    return jnp.sum(part[:, 0, 0])


def fused_linear_xent(x, w, b, targets, *, bn=None):
    """Fused linear + log_softmax NLL. Returns (loss_sum, #correct, #valid)."""
    xf, wp, bp, N, V, Dp, Vp, Np, bn = _prep_inputs_fused(x, w, b, bn)
    tiles = Np // bn
    tf = jnp.pad(targets.reshape(N, 1).astype(jnp.int32),
                 ((0, Np - N), (0, 0)), constant_values=-1)
    part_spec = pl.BlockSpec((1,) + _PART_SHAPE, lambda i: (i, 0, 0))
    loss_p, corr_p, cnt_p = pl.pallas_call(
        functools.partial(_fused_xent_kernel, n_valid=N, n_classes=V, bn=bn),
        out_shape=(
            jax.ShapeDtypeStruct((tiles,) + _PART_SHAPE, jnp.float32),
            jax.ShapeDtypeStruct((tiles,) + _PART_SHAPE, jnp.int32),
            jax.ShapeDtypeStruct((tiles,) + _PART_SHAPE, jnp.int32),
        ),
        grid_spec=pltpu.PrefetchScalarGridSpec(
            num_scalar_prefetch=0,
            grid=(tiles,),
            in_specs=[
                pl.BlockSpec((bn, Dp), lambda i: (i, 0)),
                pl.BlockSpec((Dp, Vp), lambda i: (0, 0)),
                pl.BlockSpec((1, Vp), lambda i: (0, 0)),
                # TODO(synk): (bn,1) target column DMAs lane-padded; could be
                # scalar-prefetched into SMEM, negligible at these sizes.
                pl.BlockSpec((bn, 1), lambda i: (i, 0)),
            ],
            out_specs=(part_spec, part_spec, part_spec),
        ),
        compiler_params=_cparams(),
    )(xf, wp, bp, tf)
    return (jnp.sum(loss_p[:, 0, 0]), jnp.sum(corr_p[:, 0, 0]),
            jnp.sum(cnt_p[:, 0, 0]))


def _prep_logits(x, bn):
    B, T, V = x.shape
    N = B * T
    Vp = _round_up(V, _LANES)
    if bn is None:
        per_row = 4 * Vp * 4 + 4                         # f32 logits (x2 buf) + work
        bn = _pick_bn(N, per_row, 0)
    Np = _round_up(N, bn)
    xf = jnp.pad(x.reshape(N, V).astype(jnp.float32),
                 ((0, Np - N), (0, Vp - V)), constant_values=_NEG)
    return xf, N, V, Vp, Np, bn


def energy_pallas(x, *, bn=None):
    """Energy over precomputed logits x:(B,T,V): -sum(logsumexp(x, -1))."""
    xf, N, _, Vp, Np, bn = _prep_logits(x, bn)
    tiles = Np // bn
    part = pl.pallas_call(
        functools.partial(_energy_kernel, n_valid=N, bn=bn),
        out_shape=jax.ShapeDtypeStruct((tiles,) + _PART_SHAPE, jnp.float32),
        grid_spec=pltpu.PrefetchScalarGridSpec(
            num_scalar_prefetch=0,
            grid=(tiles,),
            in_specs=[pl.BlockSpec((bn, Vp), lambda i: (i, 0))],
            out_specs=pl.BlockSpec((1,) + _PART_SHAPE, lambda i: (i, 0, 0)),
        ),
        compiler_params=_cparams(),
    )(xf)
    return jnp.sum(part[:, 0, 0])


def xent_pallas(x, targets, *, bn=None):
    """(loss_sum, #correct, #valid) over precomputed logits x:(B,T,V)."""
    xf, N, V, Vp, Np, bn = _prep_logits(x, bn)
    tiles = Np // bn
    tf = jnp.pad(targets.reshape(N, 1).astype(jnp.int32),
                 ((0, Np - N), (0, 0)), constant_values=-1)
    part_spec = pl.BlockSpec((1,) + _PART_SHAPE, lambda i: (i, 0, 0))
    loss_p, corr_p, cnt_p = pl.pallas_call(
        functools.partial(_xent_kernel, n_valid=N, n_classes=V, bn=bn),
        out_shape=(
            jax.ShapeDtypeStruct((tiles,) + _PART_SHAPE, jnp.float32),
            jax.ShapeDtypeStruct((tiles,) + _PART_SHAPE, jnp.int32),
            jax.ShapeDtypeStruct((tiles,) + _PART_SHAPE, jnp.int32),
        ),
        grid_spec=pltpu.PrefetchScalarGridSpec(
            num_scalar_prefetch=0,
            grid=(tiles,),
            in_specs=[
                pl.BlockSpec((bn, Vp), lambda i: (i, 0)),
                pl.BlockSpec((bn, 1), lambda i: (i, 0)),
            ],
            out_specs=(part_spec, part_spec, part_spec),
        ),
        compiler_params=_cparams(),
    )(xf, tf)
    return (jnp.sum(loss_p[:, 0, 0]), jnp.sum(corr_p[:, 0, 0]),
            jnp.sum(cnt_p[:, 0, 0]))


# --------------------------- model + objective ---------------------------------

class LinearModel:
    """Stand-in model head: a single linear projection to V classes.
    In EBMLoss.forward its forward pass runs fused inside the Pallas loss
    kernels (so (N, V) logits never round-trip through HBM); __call__ is only
    the pure-JAX reference / "precomputed" producer."""

    def __init__(self, w, b):
        self.w = w
        self.b = b

    def __call__(self, inputs):
        xb = inputs.astype(jnp.bfloat16).astype(jnp.float32)
        wb = self.w.astype(jnp.bfloat16).astype(jnp.float32)
        return (jnp.einsum("btd,dv->btv", xb, wb) + self.b,)


class EBMLoss:
    """JAX/Pallas port of nnet_pytorch EBMLoss.forward (hot paths kernelized)."""

    def __init__(self, ebm_weight=1.0, xent_weight=1.0, l2_energy=0.0,
                 sgld_warmup=0, sgld_decay=0.0):
        self.ebm_weight = ebm_weight
        self.xent_weight = xent_weight
        self.l2_energy = l2_energy
        self.warmup = sgld_warmup
        self.decay = sgld_decay
        self.num_warmup_updates = 0
        self.num_decay_updates = 0

    def forward(self, model, sample, precomputed=None, supervised=None):
        losses = []
        targets = sample.target
        B = sample.input.shape[0]
        T = precomputed.shape[1] if precomputed is not None else sample.input.shape[1]

        if supervised is None:
            # Fallback to the original runtime check (device->host sync).
            # Pass `supervised` statically to keep the dispatch pipeline async.
            supervised = bool(targets[0, 0] != -1)

        if (not supervised) and self.ebm_weight > 0:
            # Data energy: -sum(logsumexp(logits, -1)), fused with the linear
            # projection unless logits are precomputed.
            if precomputed is not None:
                sample_energy = energy_pallas(precomputed)
            else:
                sample_energy = fused_linear_energy(sample.input, model.w, model.b)
            avg_sample_energy = sample_energy
            if self.warmup > 0 and self.num_warmup_updates < self.warmup:
                slope = self.ebm_weight / float(self.warmup)
                curr_weight = slope * self.num_warmup_updates
                self.num_warmup_updates += 1
            else:
                factor = math.exp(-self.decay * self.num_decay_updates)
                curr_weight = self.ebm_weight * factor
                self.num_decay_updates += 1
            # TODO(synk): SGLDSampler (replay-buffer Langevin sampling over model
            # inputs) is not defined in the reference source and needs iterative
            # model-input gradients; expected_energy / loss_ebm / l2_energy on
            # generated samples are not reproduced here.
            _ = (avg_sample_energy, curr_weight, B, T)

        correct = None
        if supervised and self.xent_weight > 0:
            if precomputed is not None:
                loss_sum, correct, n_valid = xent_pallas(precomputed, targets)
            else:
                loss_sum, correct, n_valid = fused_linear_xent(
                    sample.input, model.w, model.b, targets)
            # F.nll_loss(reduction='mean'): n_valid == B*T when every target is
            # a valid class (out-of-range / padded targets are masked out).
            loss_xent = loss_sum / jnp.maximum(n_valid, 1).astype(jnp.float32)
            losses.append(self.xent_weight * loss_xent)

        loss = sum(losses) if losses else jnp.float32(0.0)
        return loss, correct


# ------------------------------ Demo / check -----------------------------------

if __name__ == "__main__":
    B, T, D, V = 2, 11, 32, 40          # N=22 (not a multiple of 8), V not 128-aligned
    key = jax.random.PRNGKey(0)
    k_in, k_w, k_b, k_t = jax.random.split(key, 4)

    feats = jax.random.normal(k_in, (B, T, D), dtype=jnp.float32)
    W = 0.1 * jax.random.normal(k_w, (D, V), dtype=jnp.float32)
    b = 0.01 * jax.random.normal(k_b, (V,), dtype=jnp.float32)
    targets = jax.random.randint(k_t, (B, T), 0, V, dtype=jnp.int32)

    model = LinearModel(W, b)
    sample = Samples(input=feats, target=targets, metadata=None)
    ebm = EBMLoss(ebm_weight=1.0, xent_weight=1.0)

    # 1) Fused supervised path (linear projection fused with the xent reduction).
    loss, correct = jax.block_until_ready(ebm.forward(model, sample, supervised=True))

    # 2) Precomputed-logits supervised path (logits-only kernels).
    logits = model(feats)[0]
    loss_pc, correct_pc = jax.block_until_ready(
        ebm.forward(model, sample, precomputed=logits, supervised=True))

    # 3) Energy kernels (EBM-branch hot path): fused and precomputed.
    e_fused = jax.block_until_ready(fused_linear_energy(feats, W, b))
    e_logits = jax.block_until_ready(energy_pallas(logits))

    # 4) Exercise the unsupervised branch (energy kernel inside forward()).
    unsup = Samples(input=feats, target=-jnp.ones_like(targets), metadata=None)
    jax.block_until_ready(ebm.forward(model, unsup, supervised=False)[0])

    # 5) Multi-tile grid + row-masking check with a deliberately tiny tile.
    ls8, c8, n8 = jax.block_until_ready(fused_linear_xent(feats, W, b, targets, bn=8))

    # Pure-JAX references (same bf16-rounded matmul inputs as the kernels).
    logits_ref = model(feats)[0]
    lse_ref = jax.scipy.special.logsumexp(logits_ref, axis=-1)
    energy_ref = -jnp.sum(lse_ref)
    lp = jax.nn.log_softmax(logits_ref, axis=-1).reshape(-1, V)
    tflat = targets.reshape(-1)
    loss_ref = -jnp.mean(lp[jnp.arange(B * T), tflat])
    correct_ref = int(jnp.sum(jnp.argmax(lp, axis=1) == tflat))

    assert jnp.allclose(loss, loss_ref, rtol=1e-4, atol=1e-4), (loss, loss_ref)
    assert int(correct) == correct_ref, (correct, correct_ref)
    assert jnp.allclose(loss_pc, loss_ref, rtol=1e-5, atol=1e-5), (loss_pc, loss_ref)
    assert int(correct_pc) == correct_ref, (correct_pc, correct_ref)
    assert jnp.allclose(e_fused, energy_ref, rtol=1e-4, atol=1e-3), (e_fused, energy_ref)
    assert jnp.allclose(e_logits, energy_ref, rtol=1e-5, atol=1e-4), (e_logits, energy_ref)
    assert jnp.allclose(ls8 / n8, loss_ref, rtol=1e-4, atol=1e-4), (ls8, n8, loss_ref)
    assert int(c8) == correct_ref and int(n8) == B * T

    print("KERNEL_OK")
</pallas_src>

<mosaic_0001>
module attributes {stable_mosaic.version = 11 : i64} {
  func.func @_fused_xent_kernel(%arg0: i32, %arg1: memref<24x128xbf16, #tpu.memory_space<vmem>>, %arg2: memref<128x128xbf16, #tpu.memory_space<vmem>>, %arg3: memref<1x128xf32, #tpu.memory_space<vmem>>, %arg4: memref<24x1xi32, #tpu.memory_space<vmem>>, %arg5: memref<1x8x128xf32, #tpu.memory_space<vmem>>, %arg6: memref<1x8x128xi32, #tpu.memory_space<vmem>>, %arg7: memref<1x8x128xi32, #tpu.memory_space<vmem>>) attributes {dimension_semantics = [#tpu.dimension_semantics<parallel>], iteration_bounds = array<i64: 1>, scalar_prefetch = 0 : i64, scratch_operands = 0 : i64, tpu.core_type = #tpu.core_type<tc>, window_params = [{transform_indices = @transform_0, window_bounds = array<i64: 24, 128>}, {pipeline_mode = #tpu.pipeline_mode<synchronous>, transform_indices = @transform_1, window_bounds = array<i64: 128, 128>}, {pipeline_mode = #tpu.pipeline_mode<synchronous>, transform_indices = @transform_2, window_bounds = array<i64: 1, 128>}, {transform_indices = @transform_3, window_bounds = array<i64: 24, 1>}, {transform_indices = @transform_4, window_bounds = array<i64: 1, 8, 128>}, {transform_indices = @transform_5, window_bounds = array<i64: 1, 8, 128>}, {transform_indices = @transform_6, window_bounds = array<i64: 1, 8, 128>}]} {
    %c0 = arith.constant 0 : index
    %c0_0 = arith.constant 0 : index
    %0 = vector.load %arg1[%c0, %c0_0] : memref<24x128xbf16, #tpu.memory_space<vmem>>, vector<24x128xbf16>
    %c0_1 = arith.constant 0 : index
    %c0_2 = arith.constant 0 : index
    %1 = vector.load %arg2[%c0_1, %c0_2] : memref<128x128xbf16, #tpu.memory_space<vmem>>, vector<128x128xbf16>
    %cst = arith.constant dense<0.000000e+00> : vector<24x128xf32>
    %2 = tpu.matmul %0, %1, %cst {dimension_numbers = #tpu.dot_dimension_numbers<[1], [0], [0], [1], [0, 0, 1, 1], [], []>} : vector<24x128xbf16>, vector<128x128xbf16>, vector<24x128xf32> -> vector<24x128xf32>
    %c0_3 = arith.constant 0 : index
    %c0_4 = arith.constant 0 : index
    %3 = vector.load %arg3[%c0_3, %c0_4] : memref<1x128xf32, #tpu.memory_space<vmem>>, vector<1x128xf32>
    %4 = vector.broadcast %3 : vector<1x128xf32> to vector<24x128xf32>
    %5 = arith.addf %2, %4 : vector<24x128xf32>
    %c0_5 = arith.constant 0 : index
    %c0_6 = arith.constant 0 : index
    %6 = vector.load %arg4[%c0_5, %c0_6] : memref<24x1xi32, #tpu.memory_space<vmem>>, vector<24x1xi32>
    %c24_i32 = arith.constant 24 : i32
    %7 = arith.muli %arg0, %c24_i32 : i32
    %8 = tpu.iota {dimensions = array<i32: 0>} : vector<24x1xi32>
    %9 = vector.broadcast %7 : i32 to vector<24x1xi32>
    %10 = arith.addi %9, %8 : vector<24x1xi32>
    %c22_i32 = arith.constant 22 : i32
    %11 = vector.broadcast %c22_i32 : i32 to vector<24x1xi32>
    %12 = arith.cmpi slt, %10, %11 : vector<24x1xi32>
    %cst_7 = arith.constant dense<0xFF800000> : vector<24xf32>
    %13 = vector.multi_reduction <maximumf>, %5, %cst_7 [1] : vector<24x128xf32> to vector<24xf32>
    %14 = vector.shape_cast %13 : vector<24xf32> to vector<24x1xf32>
    %15 = vector.broadcast %14 : vector<24x1xf32> to vector<24x128xf32>
    %16 = arith.subf %5, %15 : vector<24x128xf32>
    %17 = math.exp %16 : vector<24x128xf32>
    %cst_8 = arith.constant dense<0.000000e+00> : vector<24xf32>
    %18 = vector.multi_reduction <add>, %17, %cst_8 [1] : vector<24x128xf32> to vector<24xf32>
    %19 = vector.shape_cast %18 : vector<24xf32> to vector<24x1xf32>
    %20 = math.log %19 : vector<24x1xf32>
    %21 = arith.addf %20, %14 : vector<24x1xf32>
    %22 = tpu.iota {dimensions = array<i32: 1>} : vector<24x128xi32>
    %23 = vector.broadcast %6 : vector<24x1xi32> to vector<24x128xi32>
    %24 = arith.cmpi eq, %22, %23 : vector<24x128xi32>
    %cst_9 = arith.constant 0.000000e+00 : f32
    %25 = vector.broadcast %cst_9 : f32 to vector<24x128xf32>
    %26 = arith.select %24, %5, %25 : vector<24x128xi1>, vector<24x128xf32>
    %cst_10 = arith.constant dense<0.000000e+00> : vector<24xf32>
    %27 = vector.multi_reduction <add>, %26, %cst_10 [1] : vector<24x128xf32> to vector<24xf32>
    %28 = vector.shape_cast %27 : vector<24xf32> to vector<24x1xf32>
    %c0_i32 = arith.constant 0 : i32
    %29 = vector.broadcast %c0_i32 : i32 to vector<24x1xi32>
    %30 = arith.cmpi sge, %6, %29 : vector<24x1xi32>
    %31 = arith.andi %12, %30 : vector<24x1xi1>
    %c40_i32 = arith.constant 40 : i32
    %32 = vector.broadcast %c40_i32 : i32 to vector<24x1xi32>
    %33 = arith.cmpi slt, %6, %32 : vector<24x1xi32>
    %34 = arith.andi %31, %33 : vector<24x1xi1>
    %35 = arith.subf %21, %28 : vector<24x1xf32>
    %cst_11 = arith.constant 0.000000e+00 : f32
    %36 = vector.broadcast %cst_11 : f32 to vector<24x1xf32>
    %37 = arith.select %34, %35, %36 : vector<24x1xi1>, vector<24x1xf32>
    %38 = vector.shape_cast %37 : vector<24x1xf32> to vector<1x24x1xf32>
    %cst_12 = arith.constant dense<0.000000e+00> : vector<1xf32>
    %39 = vector.multi_reduction <add>, %38, %cst_12 [1, 2] : vector<1x24x1xf32> to vector<1xf32>
    %40 = vector.shape_cast %39 : vector<1xf32> to vector<1x1x1xf32>
    %41 = vector.extract %40[0, 0, 0] : f32 from vector<1x1x1xf32>
    %42 = vector.broadcast %14 : vector<24x1xf32> to vector<24x128xf32>
    %43 = arith.cmpf oeq, %5, %42 : vector<24x128xf32>
    %c128_i32 = arith.constant 128 : i32
    %44 = vector.broadcast %c128_i32 : i32 to vector<24x128xi32>
    %45 = arith.select %43, %22, %44 : vector<24x128xi1>, vector<24x128xi32>
    %cst_13 = arith.constant dense<2147483647> : vector<24xi32>
    %46 = vector.multi_reduction <minsi>, %45, %cst_13 [1] : vector<24x128xi32> to vector<24xi32>
    %47 = vector.shape_cast %46 : vector<24xi32> to vector<24x1xi32>
    %48 = arith.cmpi eq, %47, %6 : vector<24x1xi32>
    %49 = arith.andi %34, %48 : vector<24x1xi1>
    %c1_i32 = arith.constant 1 : i32
    %c0_i32_14 = arith.constant 0 : i32
    %50 = vector.broadcast %c1_i32 : i32 to vector<24x1xi32>
    %51 = vector.broadcast %c0_i32_14 : i32 to vector<24x1xi32>
    %52 = arith.select %49, %50, %51 : vector<24x1xi1>, vector<24x1xi32>
    %53 = vector.shape_cast %52 : vector<24x1xi32> to vector<1x24x1xi32>
    %cst_15 = arith.constant dense<0> : vector<1xi32>
    %54 = vector.multi_reduction <add>, %53, %cst_15 [1, 2] : vector<1x24x1xi32> to vector<1xi32>
    %55 = vector.shape_cast %54 : vector<1xi32> to vector<1x1x1xi32>
    %56 = vector.extract %55[0, 0, 0] : i32 from vector<1x1x1xi32>
    %57 = arith.extui %34 : vector<24x1xi1> to vector<24x1xi32>
    %58 = vector.shape_cast %57 : vector<24x1xi32> to vector<1x24x1xi32>
    %cst_16 = arith.constant dense<0> : vector<1xi32>
    %59 = vector.multi_reduction <add>, %58, %cst_16 [1, 2] : vector<1x24x1xi32> to vector<1xi32>
    %60 = vector.shape_cast %59 : vector<1xi32> to vector<1x1x1xi32>
    %61 = vector.extract %60[0, 0, 0] : i32 from vector<1x1x1xi32>
    %62 = vector.broadcast %41 : f32 to vector<1x8x128xf32>
    %c0_17 = arith.constant 0 : index
    %c0_18 = arith.constant 0 : index
    %c0_19 = arith.constant 0 : index
    %63 = vector.load %arg5[%c0_17, %c0_18, %c0_19] : memref<1x8x128xf32, #tpu.memory_space<vmem>>, vector<1x8x128xf32>
    tpu.vector_store %arg5[%c0_17, %c0_18, %c0_19], %62 {strides = array<i32>} : memref<1x8x128xf32, #tpu.memory_space<vmem>>, vector<1x8x128xf32>,
    %64 = vector.broadcast %56 : i32 to vector<1x8x128xi32>
    %c0_20 = arith.constant 0 : index
    %c0_21 = arith.constant 0 : index
    %c0_22 = arith.constant 0 : index
    %65 = vector.load %arg6[%c0_20, %c0_21, %c0_22] : memref<1x8x128xi32, #tpu.memory_space<vmem>>, vector<1x8x128xi32>
    tpu.vector_store %arg6[%c0_20, %c0_21, %c0_22], %64 {strides = array<i32>} : memref<1x8x128xi32, #tpu.memory_space<vmem>>, vector<1x8x128xi32>,
    %66 = vector.broadcast %61 : i32 to vector<1x8x128xi32>
    %c0_23 = arith.constant 0 : index
    %c0_24 = arith.constant 0 : index
    %c0_25 = arith.constant 0 : index
    %67 = vector.load %arg7[%c0_23, %c0_24, %c0_25] : memref<1x8x128xi32, #tpu.memory_space<vmem>>, vector<1x8x128xi32>
    tpu.vector_store %arg7[%c0_23, %c0_24, %c0_25], %66 {strides = array<i32>} : memref<1x8x128xi32, #tpu.memory_space<vmem>>, vector<1x8x128xi32>,
    return
  }
  func.func @transform_0(%arg0: i32) -> (i32, i32) {
    %c0_i32 = arith.constant 0 : i32
    %c0_i32_0 = arith.constant 0 : i32
    return %arg0, %c0_i32 : i32, i32
  }
  func.func @transform_1(%arg0: i32) -> (i32, i32) {
    %c0_i32 = arith.constant 0 : i32
    %c0_i32_0 = arith.constant 0 : i32
    %c0_i32_1 = arith.constant 0 : i32
    return %c0_i32, %c0_i32_0 : i32, i32
  }
  func.func @transform_2(%arg0: i32) -> (i32, i32) {
    %c0_i32 = arith.constant 0 : i32
    %c0_i32_0 = arith.constant 0 : i32
    %c0_i32_1 = arith.constant 0 : i32
    return %c0_i32, %c0_i32_0 : i32, i32
  }
  func.func @transform_3(%arg0: i32) -> (i32, i32) {
    %c0_i32 = arith.constant 0 : i32
    %c0_i32_0 = arith.constant 0 : i32
    return %arg0, %c0_i32 : i32, i32
  }
  func.func @transform_4(%arg0: i32) -> (i32, i32, i32) {
    %c0_i32 = arith.constant 0 : i32
    %c0_i32_0 = arith.constant 0 : i32
    %c0_i32_1 = arith.constant 0 : i32
    return %arg0, %c0_i32, %c0_i32_0 : i32, i32, i32
  }
  func.func @transform_5(%arg0: i32) -> (i32, i32, i32) {
    %c0_i32 = arith.constant 0 : i32
    %c0_i32_0 = arith.constant 0 : i32
    %c0_i32_1 = arith.constant 0 : i32
    return %arg0, %c0_i32, %c0_i32_0 : i32, i32, i32
  }
  func.func @transform_6(%arg0: i32) -> (i32, i32, i32) {
    %c0_i32 = arith.constant 0 : i32
    %c0_i32_0 = arith.constant 0 : i32
    %c0_i32_1 = arith.constant 0 : i32
    return %arg0, %c0_i32, %c0_i32_0 : i32, i32, i32
  }
}

</mosaic_0001>

<llo_original>
// kernel: tpu_custom_call.1
$region0: #{tpu_custom_call.1}
  #allocation0 [shape = 'u32[]', space=smem, size = 0x4, offset = 0x4, fixed_abs, tag = 'smem constant byte address 0x4 - core index']
  #allocation1 [shape = 'u32[144,128]{1,0:T(1,128)}', space=vmem, size = 0x12000, scoped, tag = 'internal scratch']
  %s0 = inlined_call_operand.vmem [shape: bf16[24,128], index: 0, kind: input, shape index: {}]
  %s1 = inlined_call_operand.hbm [shape: bf16[128,128], index: 1, kind: input, shape index: {}]
  %s2 = inlined_call_operand.vmem [shape: f32[1,128], index: 2, kind: input, shape index: {}]
  %s3 = inlined_call_operand.vmem [shape: s32[24,1], index: 3, kind: input, shape index: {}]
  %s4 = inlined_call_operand.hbm [shape: f32[1,8,128], index: 4, kind: output, shape index: {0}]
  %s5 = inlined_call_operand.hbm [shape: s32[1,8,128], index: 5, kind: output, shape index: {1}]
  %s6 = inlined_call_operand.hbm [shape: s32[1,8,128], index: 6, kind: output, shape index: {2}]
  %7 = xla_tuple %s4, %s5, %s6
  %s8 = sld [smem:[#allocation0]]
  $region46: #{tpu_custom_call.1} parent=0
    _
  %s10 = ssub.s32 1, %s8
  %s11 = scalar_select 0, %s10, %s8
  $region1: #{tpu_custom_call.1} parent=0
    #allocation2 [shape = 'u8[32768]{0}', space=vmem, size = 0x8000, scoped, tag = 'input window, operand 1, single buffered']
    #allocation3 [shape = 's32[1]{0}', space=sflag, size = 0x4, scoped, tag = 'scoped memory for tpu_custom_call.1']
    #allocation4 [shape = 's32[1]{0}', space=sflag, size = 0x4, scoped, tag = 'scoped memory for tpu_custom_call.1']
    #allocation5 [shape = 'u8[4096]{0}', space=vmem, size = 0x1000, scoped, tag = 'output window, operand 0, single buffered']
    #allocation6 [shape = 'u8[4096]{0}', space=vmem, size = 0x1000, scoped, tag = 'output window, operand 1, single buffered']
    #allocation7 [shape = 's32[1]{0}', space=sflag, size = 0x4, scoped, tag = 'scoped memory for tpu_custom_call.1']
    #allocation8 [shape = 'u8[4096]{0}', space=vmem, size = 0x1000, scoped, tag = 'output window, operand 2, single buffered']
    %12 = vsyncpa [#allocation3], 0
    %13 = vsyncpa [#allocation4], 0
    %14 = vsyncpa [#allocation7], 0
    // Predicated region
    $region2: #{tpu_custom_call.1} parent=1 // pred_check
      _
    $region3: #{tpu_custom_call.1} parent=1 // pred_check_branch
      %16 = sbr.rel (0) target = $region5
    $region4: #{tpu_custom_call.1} parent=1 // pred_region
      _
    $region5: #{tpu_custom_call.1} parent=1 // pred_fallthru
      _
    // Predicated region
    $region6: #{tpu_custom_call.1} parent=1 // pred_check
      _
    $region7: #{tpu_custom_call.1} parent=1 // pred_check_branch
      %18 = sbr.rel (0) target = $region9
    $region8: #{tpu_custom_call.1} parent=1 // pred_region
      %s20 = ssub.s32 1024, 1024
      %21 = vsyncadd [#allocation3], %s20
      %s22 = sshll.u32 [#allocation2], 4
      %s23 = int_to_ptr.vmem [resolvable:$true] %s22
      %28 = dma.hbm_to_vmem [thread:$0]  %s1, 1024, %s23, [#allocation3], 64, 64, 4
    $region9: #{tpu_custom_call.1} parent=1 // pred_fallthru
      _
    // Predicated region
    $region10: #{tpu_custom_call.1} parent=1 // pred_check
      _
    $region11: #{tpu_custom_call.1} parent=1 // pred_check_branch
      %30 = sbr.rel (0) target = $region13
    $region12: #{tpu_custom_call.1} parent=1 // pred_region
      _
    $region13: #{tpu_custom_call.1} parent=1 // pred_fallthru
      _
    // Predicated region
    $region14: #{tpu_custom_call.1} parent=1 // pred_check
      _
    $region15: #{tpu_custom_call.1} parent=1 // pred_check_branch
      %32 = sbr.rel (0) target = $region17
    $region16: #{tpu_custom_call.1} parent=1 // pred_region
      _
    $region17: #{tpu_custom_call.1} parent=1 // pred_fallthru
      _
    // Predicated region
    $region18: #{tpu_custom_call.1} parent=1 // pred_check
      _
    $region19: #{tpu_custom_call.1} parent=1 // pred_check_branch
      %34 = sbr.rel (0) target = $region21
    $region20: #{tpu_custom_call.1} parent=1 // pred_region
      %35 = dma.done [#allocation3], 1024
    $region21: #{tpu_custom_call.1} parent=1 // pred_fallthru
      _
    %v37 = vld [vmem:[%s0] sm:$0xf]
    %v38 = vld [vmem:[%s0 + $0x4] sm:$0xf]
    %v39 = vld [vmem:[%s0 + $0x8] sm:$0xf]
    %v40 = vld [vmem:[#allocation2] sm:$0xf]
    %v41 = vld [vmem:[#allocation2 + $0x4] sm:$0xf]
    %v42 = vld [vmem:[#allocation2 + $0x8] sm:$0xf]
    %v43 = vld [vmem:[#allocation2 + $0xc] sm:$0xf]
    %v44 = vld [vmem:[#allocation2 + $0x10] sm:$0xf]
    %v45 = vld [vmem:[#allocation2 + $0x14] sm:$0xf]
    %v46 = vld [vmem:[#allocation2 + $0x18] sm:$0xf]
    %v47 = vld [vmem:[#allocation2 + $0x1c] sm:$0xf]
    %v48 = vld [vmem:[#allocation2 + $0x20] sm:$0xf]
    %v49 = vld [vmem:[#allocation2 + $0x24] sm:$0xf]
    %v50 = vld [vmem:[#allocation2 + $0x28] sm:$0xf]
    %v51 = vld [vmem:[#allocation2 + $0x2c] sm:$0xf]
    %v52 = vld [vmem:[#allocation2 + $0x30] sm:$0xf]
    %v53 = vld [vmem:[#allocation2 + $0x34] sm:$0xf]
    %v54 = vld [vmem:[#allocation2 + $0x38] sm:$0xf]
    %v55 = vld [vmem:[#allocation2 + $0x3c] sm:$0xf]
    %v56 = vld [vmem:[%s2] sm:$0x1]
    %v58 = vlaneseq
    %v59 = vshrl.u32 %v58, 7
    %v60 = vsub.s32 0, %v59
    %v61 = vrot.slane %v56, %v60
    %v66 = vunpack.c.l.b16 %v37
    %v67 = vunpack.c.l.b16 %v38
    %v68 = vunpack.c.l.b16 %v39
    %v69 = vpack.c.b16 %v67, %v66
    %v70 = vpack.c.b16 %v68, %v68
    %v89 = vunpack.c.l.b16 %v40
    %v90 = vunpack.c.l.b16 %v41
    %v91 = vunpack.c.l.b16 %v42
    %v92 = vunpack.c.l.b16 %v43
    %v93 = vunpack.c.l.b16 %v44
    %v94 = vunpack.c.l.b16 %v45
    %v95 = vunpack.c.l.b16 %v46
    %v96 = vunpack.c.l.b16 %v47
    %v97 = vunpack.c.l.b16 %v48
    %v98 = vunpack.c.l.b16 %v49
    %v99 = vunpack.c.l.b16 %v50
    %v100 = vunpack.c.l.b16 %v51
    %v101 = vunpack.c.l.b16 %v52
    %v102 = vunpack.c.l.b16 %v53
    %v103 = vunpack.c.l.b16 %v54
    %v104 = vunpack.c.l.b16 %v55
    %v105 = vpack.c.b16 %v90, %v89
    %v106 = vpack.c.b16 %v92, %v91
    %v107 = vpack.c.b16 %v94, %v93
    %v108 = vpack.c.b16 %v96, %v95
    %v109 = vpack.c.b16 %v98, %v97
    %v110 = vpack.c.b16 %v100, %v99
    %v111 = vpack.c.b16 %v102, %v101
    %v112 = vpack.c.b16 %v104, %v103
    %121 = vmatprep.subr.bf16.mxu0 0
    %122 = vmatpush1.bf16.msra.mxu0 %v105
    %123 = vmatprep.subr.bf16.mxu0 0
    %124 = vmatpush1.bf16.msra.mxu0 %v106
    %125 = vmatprep.subr.bf16.mxu0 0
    %126 = vmatpush1.bf16.msra.mxu0 %v107
    %127 = vmatprep.subr.bf16.mxu0 0
    %128 = vmatpush1.bf16.msra.mxu0 %v108
    %129 = vmatprep.subr.bf16.mxu0 0
    %130 = vmatpush1.bf16.msra.mxu0 %v109
    %131 = vmatprep.subr.bf16.mxu0 0
    %132 = vmatpush1.bf16.msra.mxu0 %v110
    %133 = vmatprep.subr.bf16.mxu0 0
    %134 = vmatpush1.bf16.msra.mxu0 %v111
    %135 = vmatprep.subr.bf16.mxu0 0
    %136 = vmatpush1.bf16.msra.mxu0 %v112
    %137 = vmatprep.subr.bf16.mxu0 0
    %138 = vmatpush1.bf16.msra.mxu0 0
    %139 = vmatprep.subr.bf16.mxu0 0
    %140 = vmatpush1.bf16.msra.mxu0 0
    %141 = vmatprep.subr.bf16.mxu0 0
    %142 = vmatpush1.bf16.msra.mxu0 0
    %143 = vmatprep.subr.bf16.mxu0 0
    %144 = vmatpush1.bf16.msra.mxu0 0
    %145 = vmatprep.subr.bf16.mxu0 0
    %146 = vmatpush1.bf16.msra.mxu0 0
    %147 = vmatprep.subr.bf16.mxu0 0
    %148 = vmatpush1.bf16.msra.mxu0 0
    %149 = vmatprep.subr.bf16.mxu0 0
    %150 = vmatpush1.bf16.msra.mxu0 0
    %151 = vmatprep.subr.bf16.mxu0 0
    %152 = vmatpush1.bf16.msra.mxu0 0
    %153 = vmatprep.mubr.bf16.mxu0 0
    %154 = vmatmul.mubr.bf16.gmra.mrb[0].mxu0 %v69
    %v155 = vpop.f32.mrb[0].mxu0
    %v156 = vadd.f32 %v61, %v155
    %v157 = vpop.f32.mrb[0].mxu0
    %v158 = vpop.f32.mrb[0].mxu0
    %v159 = vadd.f32 %v61, %v158
    %v160 = vpop.f32.mrb[0].mxu0
    %161 = vmatprep.mubr.bf16.mxu0 0
    %162 = vmatmul.mubr.bf16.gmra.mrb[0].mxu0 %v70
    %v163 = vpop.f32.mrb[0].mxu0
    %v164 = vadd.f32 %v61, %v163
    %v165 = vpop.f32.mrb[0].mxu0
    %v166 = vpop.f32.mrb[0].mxu0
    %v167 = vpop.f32.mrb[0].mxu0
    %168 = vdwg.mxu0
    %v169 = vld [vmem:[%s3] sm:$0xff]
    %v170 = vld [vmem:[%s3 + $0x8] sm:$0xff]
    %v171 = vld [vmem:[%s3 + $0x10] sm:$0xff]
    %s172 = smul.u32 0, 24
    %v173 = vlaneseq
    %v174 = vshrl.u32 %v173, 7
    %v175 = vadd.s32 %v174, 8
    %v176 = vadd.s32 %v174, 16
    %v177 = vstv %s172
    %v178 = vadd.s32 %v177, %v174
    %v179 = vadd.s32 %v177, %v175
    %v180 = vadd.s32 %v177, %v176
    %vm181 = vcmp.lt.s32.totalorder %v178, 22
    %vm182 = vcmp.lt.s32.totalorder %v179, 22
    %vm183 = vcmp.lt.s32.totalorder %v180, 22
    %184 = vmax.xlane.f32.xlu0 %v156
    %v185 = vpop.xlane.xlu0 %184
    %186 = vmax.xlane.f32.xlu0 %v159
    %v187 = vpop.xlane.xlu0 %186
    %188 = vmax.xlane.f32.xlu0 %v164
    %v189 = vpop.xlane.xlu0 %188
    %v190 = vsub.f32 %v156, %v185
    %v191 = vsub.f32 %v159, %v187
    %v192 = vsub.f32 %v164, %v189
    %v193 = vmul.f32 %v190, 1.442695
    %v194 = vpow.pop %v193
    %v195 = vmul.f32 %v191, 1.442695
    %v196 = vpow.pop %v195
    %v197 = vmul.f32 %v192, 1.442695
    %v198 = vpow.pop %v197
    %199 = vadd.xlane.f32.xlu0 %v194
    %v200 = vpop.xlane.xlu0 %199
    %201 = vadd.xlane.f32.xlu0 %v196
    %v202 = vpop.xlane.xlu0 %201
    %203 = vadd.xlane.f32.xlu0 %v198
    %v204 = vpop.xlane.xlu0 %203
    %v205 = vlog2.pop %v200
    %v206 = vmul.f32 %v205, 0.6931472
    %v207 = vlog2.pop %v202
    %v208 = vmul.f32 %v207, 0.6931472
    %v209 = vlog2.pop %v204
    %v210 = vmul.f32 %v209, 0.6931472
    %v211 = vadd.f32 %v206, %v185
    %v212 = vadd.f32 %v208, %v187
    %v213 = vadd.f32 %v210, %v189
    %v214 = vlaneseq
    %v215 = vand.u32 %v214, 127
    %216 = vset.pattern.permute.xlu0 0
    %217 = vperm.xlu0 %216, %v169
    %v218 = vpop.permute.xlu0 %217
    %219 = vset.pattern.permute.xlu0 0
    %220 = vperm.xlu0 %219, %v170
    %v221 = vpop.permute.xlu0 %220
    %222 = vset.pattern.permute.xlu0 0
    %223 = vperm.xlu0 %222, %v171
    %v224 = vpop.permute.xlu0 %223
    %vm225 = vcmp.eq.s32.totalorder %v215, %v218
    %vm226 = vcmp.eq.s32.totalorder %v215, %v221
    %vm227 = vcmp.eq.s32.totalorder %v215, %v224
    %v228 = vsel %vm225, %v156, 0.0
    %v229 = vsel %vm226, %v159, 0.0
    %v230 = vsel %vm227, %v164, 0.0
    %231 = vadd.xlane.f32.xlu0 %v228
    %v232 = vpop.xlane.xlu0 %231
    %233 = vadd.xlane.f32.xlu0 %v229
    %v234 = vpop.xlane.xlu0 %233
    %235 = vadd.xlane.f32.xlu0 %v230
    %v236 = vpop.xlane.xlu0 %235
    %vm237 = vcmp.ge.s32.totalorder %v169, 0
    %vm238 = vcmp.ge.s32.totalorder %v170, 0
    %vm239 = vcmp.ge.s32.totalorder %v171, 0
    %vm240 = vmand %vm181, %vm237
    %vm241 = vmand %vm182, %vm238
    %vm242 = vmand %vm183, %vm239
    %vm243 = vcmp.lt.s32.totalorder %v169, 40
    %vm244 = vcmp.lt.s32.totalorder %v170, 40
    %vm245 = vcmp.lt.s32.totalorder %v171, 40
    %vm246 = vmand %vm240, %vm243
    %vm247 = vmand %vm241, %vm244
    %vm248 = vmand %vm242, %vm245
    %v249 = vsub.f32 %v211, %v232
    %v250 = vsub.f32 %v212, %v234
    %v251 = vsub.f32 %v213, %v236
    %v252 = vsel %vm246, %v249, 0.0
    %v253 = vsel %vm247, %v250, 0.0
    %v254 = vsel %vm248, %v251, 0.0
    %vm255 = vcmask 7168
    %v256 = vsel %vm255, %v252, 0.0
    %v257 = vsel %vm255, %v253, 0.0
    %v258 = vadd.f32 %v256, %v257
    %v259 = vsel %vm255, %v254, 0.0
    %v260 = vadd.f32 %v258, %v259
    %261 = vadd.xlane.f32.xlu0 %v260
    %v262 = vpop.xlane.xlu0 %261
    %v263 = vrot.slane %v262, 4
    %v264 = vadd.f32 %v262, %v263
    %v265 = vrot.slane %v264, 2
    %v266 = vadd.f32 %v264, %v265
    %v267 = vrot.slane %v266, 1
    %v268 = vadd.f32 %v266, %v267
    %s269 = vtos %v268
    %vm270 = vcmp.eq.f32.partialorder %v156, %v185
    %vm271 = vcmp.eq.f32.partialorder %v159, %v187
    %vm272 = vcmp.eq.f32.partialorder %v164, %v189
    %v273 = vsel %vm270, %v215, 128
    %v274 = vsel %vm271, %v215, 128
    %v275 = vsel %vm272, %v215, 128
    %v276 = vand.u32 %v273, 65535
    %v277 = vshra.s32 %v273, 16
    %v278 = vcvt.s32.f32 %v276
    %v279 = vcvt.s32.f32 %v277
    %280 = vmin.xlane.f32.xlu0 %v279
    %v281 = vpop.xlane.xlu0 %280
    %vm282 = vcmp.eq.f32.partialorder %v279, %v281
    %v283 = vsel %vm282, %v278, inf
    %284 = vmin.xlane.f32.xlu0 %v283
    %v285 = vpop.xlane.xlu0 %284
    %v286 = vcvt.f32.s32 %v285
    %v287 = vcvt.f32.s32 %v281
    %v288 = vshll.u32 %v287, 16
    %v289 = vadd.s32 %v288, %v286
    %v290 = vand.u32 %v274, 65535
    %v291 = vshra.s32 %v274, 16
    %v292 = vcvt.s32.f32 %v290
    %v293 = vcvt.s32.f32 %v291
    %294 = vmin.xlane.f32.xlu0 %v293
    %v295 = vpop.xlane.xlu0 %294
    %vm296 = vcmp.eq.f32.partialorder %v293, %v295
    %v297 = vsel %vm296, %v292, inf
    %298 = vmin.xlane.f32.xlu0 %v297
    %v299 = vpop.xlane.xlu0 %298
    %v300 = vcvt.f32.s32 %v299
    %v301 = vcvt.f32.s32 %v295
    %v302 = vshll.u32 %v301, 16
    %v303 = vadd.s32 %v302, %v300
    %v304 = vand.u32 %v275, 65535
    %v305 = vshra.s32 %v275, 16
    %v306 = vcvt.s32.f32 %v304
    %v307 = vcvt.s32.f32 %v305
    %308 = vmin.xlane.f32.xlu0 %v307
    %v309 = vpop.xlane.xlu0 %308
    %vm310 = vcmp.eq.f32.partialorder %v307, %v309
    %v311 = vsel %vm310, %v306, inf
    %312 = vmin.xlane.f32.xlu0 %v311
    %v313 = vpop.xlane.xlu0 %312
    %v314 = vcvt.f32.s32 %v313
    %v315 = vcvt.f32.s32 %v309
    %v316 = vshll.u32 %v315, 16
    %v317 = vadd.s32 %v316, %v314
    %vm318 = vcmp.eq.s32.totalorder %v289, %v169
    %vm319 = vcmp.eq.s32.totalorder %v303, %v170
    %vm320 = vcmp.eq.s32.totalorder %v317, %v171
    %vm321 = vmand %vm246, %vm318
    %vm322 = vmand %vm247, %vm319
    %vm323 = vmand %vm248, %vm320
    %v324 = vsel %vm321, 1, 0
    %v325 = vsel %vm322, 1, 0
    %v326 = vsel %vm323, 1, 0
    %v327 = vsel %vm255, %v324, 0
    %v328 = vsel %vm255, %v325, 0
    %v329 = vsel %vm255, %v326, 0
    %v330 = vadd.s32 %v327, %v328
    %v331 = vadd.s32 %v330, %v329
    %v332 = vand.u32 %v331, 65535
    %v333 = vshrl.u32 %v331, 16
    %v334 = vcvt.s32.f32 %v332
    %v335 = vcvt.s32.f32 %v333
    %336 = vadd.xlane.f32.xlu0 %v334
    %v337 = vpop.xlane.xlu0 %336
    %338 = vadd.xlane.f32.xlu0 %v335
    %v339 = vpop.xlane.xlu0 %338
    %v340 = vcvt.f32.s32 %v337
    %v341 = vcvt.f32.s32 %v339
    %v342 = vshll.u32 %v341, 16
    %v343 = vadd.s32 %v342, %v340
    %v344 = vrot.slane %v343, 4
    %v345 = vadd.s32 %v343, %v344
    %v346 = vrot.slane %v345, 2
    %v347 = vadd.s32 %v345, %v346
    %v348 = vrot.slane %v347, 1
    %v349 = vadd.s32 %v347, %v348
    %s350 = vtos %v349
    %v351 = vsel %vm246, 1, 0
    %v352 = vsel %vm247, 1, 0
    %v353 = vsel %vm248, 1, 0
    %v354 = vsel %vm255, %v351, 0
    %v355 = vsel %vm255, %v352, 0
    %v356 = vsel %vm255, %v353, 0
    %v357 = vadd.s32 %v354, %v355
    %v358 = vadd.s32 %v357, %v356
    %v359 = vand.u32 %v358, 65535
    %v360 = vshrl.u32 %v358, 16
    %v361 = vcvt.s32.f32 %v359
    %v362 = vcvt.s32.f32 %v360
    %363 = vadd.xlane.f32.xlu0 %v361
    %v364 = vpop.xlane.xlu0 %363
    %365 = vadd.xlane.f32.xlu0 %v362
    %v366 = vpop.xlane.xlu0 %365
    %v367 = vcvt.f32.s32 %v364
    %v368 = vcvt.f32.s32 %v366
    %v369 = vshll.u32 %v368, 16
    %v370 = vadd.s32 %v369, %v367
    %v371 = vrot.slane %v370, 4
    %v372 = vadd.s32 %v370, %v371
    %v373 = vrot.slane %v372, 2
    %v374 = vadd.s32 %v372, %v373
    %v375 = vrot.slane %v374, 1
    %v376 = vadd.s32 %v374, %v375
    %s377 = vtos %v376
    %v378 = vstv %s269
    %379 = vst [vmem:[#allocation5] sm:$0xff] %v378
    %v380 = vstv %s350
    %381 = vst [vmem:[#allocation6] sm:$0xff] %v380
    %v382 = vstv %s377
    %383 = vst [vmem:[#allocation8] sm:$0xff] %v382
    // Predicated region
    $region22: #{tpu_custom_call.1} parent=1 // pred_check
      _
    $region23: #{tpu_custom_call.1} parent=1 // pred_check_branch
      %385 = sbr.rel (0) target = $region25
    $region24: #{tpu_custom_call.1} parent=1 // pred_region
      %s387 = ssub.s32 128, 128
      %388 = vsyncadd [#allocation4], %s387
      %s390 = sshll.u32 [#allocation5], 4
      %s391 = int_to_ptr.vmem [resolvable:$true] %s390
      %393 = dma.vmem_to_hbm [thread:$0]  %s391, 128, %s4, [#allocation4]
    $region25: #{tpu_custom_call.1} parent=1 // pred_fallthru
      _
    // Predicated region
    $region26: #{tpu_custom_call.1} parent=1 // pred_check
      _
    $region27: #{tpu_custom_call.1} parent=1 // pred_check_branch
      %395 = sbr.rel (0) target = $region29
    $region28: #{tpu_custom_call.1} parent=1 // pred_region
      %s397 = ssub.s32 128, 128
      %398 = vsyncadd [#allocation7], %s397
      %s400 = sshll.u32 [#allocation6], 4
      %s401 = int_to_ptr.vmem [resolvable:$true] %s400
      %403 = dma.vmem_to_hbm [thread:$0]  %s401, 128, %s5, [#allocation7]
    $region29: #{tpu_custom_call.1} parent=1 // pred_fallthru
      _
    // Predicated region
    $region30: #{tpu_custom_call.1} parent=1 // pred_check
      _
    $region31: #{tpu_custom_call.1} parent=1 // pred_check_branch
      %405 = sbr.rel (0) target = $region33
    $region32: #{tpu_custom_call.1} parent=1 // pred_region
      %s407 = ssub.s32 128, 128
      %408 = vsyncadd [#allocation7], %s407
      %s410 = sshll.u32 [#allocation8], 4
      %s411 = int_to_ptr.vmem [resolvable:$true] %s410
      %413 = dma.vmem_to_hbm [thread:$0]  %s411, 128, %s6, [#allocation7]
    $region33: #{tpu_custom_call.1} parent=1 // pred_fallthru
      _
    // Predicated region
    $region34: #{tpu_custom_call.1} parent=1 // pred_check
      _
    $region35: #{tpu_custom_call.1} parent=1 // pred_check_branch
      %415 = sbr.rel (0) target = $region37
    $region36: #{tpu_custom_call.1} parent=1 // pred_region
      %416 = dma.done [#allocation4], 128
    $region37: #{tpu_custom_call.1} parent=1 // pred_fallthru
      _
    // Predicated region
    $region38: #{tpu_custom_call.1} parent=1 // pred_check
      _
    $region39: #{tpu_custom_call.1} parent=1 // pred_check_branch
      %418 = sbr.rel (0) target = $region41
    $region40: #{tpu_custom_call.1} parent=1 // pred_region
      %419 = dma.done [#allocation7], 128
    $region41: #{tpu_custom_call.1} parent=1 // pred_fallthru
      _
    // Predicated region
    $region42: #{tpu_custom_call.1} parent=1 // pred_check
      _
    $region43: #{tpu_custom_call.1} parent=1 // pred_check_branch
      %421 = sbr.rel (0) target = $region45
    $region44: #{tpu_custom_call.1} parent=1 // pred_region
      %422 = dma.done [#allocation7], 128
    $region45: #{tpu_custom_call.1} parent=1 // pred_fallthru
      _
    %423 = vsyncpa [#allocation3], 1
    %424 = vsyncpa [#allocation4], 1
    %425 = vsyncpa [#allocation7], 1

</llo_original>
